<compile_context>
chip_gen: v7x
topology: tpu7x:2x2x1
jax: 0.10.0
libtpu: 0.0.40
codegen_flags: <defaults>
</compile_context>

<pallas_src>
import functools
import math

import jax
import jax.numpy as jnp
from jax.experimental import pallas as pl
from jax.experimental.pallas import tpu as pltpu

HIDDEN = 8
_P_ROWS = 5 * HIDDEN   # packed bias/head slab rows (40 = multiple of 8)


def _round_up(n, m):
    return ((n + m - 1) // m) * m


def dqn_critic_kernel(x_ref, w1_ref, w23_ref, p_ref, out_ref):
    """One batch tile of the critic MLP in batch-on-lanes layout.

    x_ref  : (in_features, TB)  features on sublanes, batch on lanes.
    w1_ref : (8, in_features)   hidden1 weight, PyTorch (out, in) layout.
    w23_ref: (16, 8)            rows 0:8 = W2, rows 8:16 = W3.
    p_ref  : (40, 1)            rows 0:8 = b1, 8:16 = b2, 16:24 = b3,
                                24:32 = W4 (output head), row 32 = b4.
                                All unpacks are static sublane slices.
    out_ref: (1, TB)            lane-dense output row.
    """
    x = x_ref[...]
    w1 = w1_ref[...]
    w23 = w23_ref[...]
    p = p_ref[...]

    w2 = w23[0:HIDDEN, :]
    w3 = w23[HIDDEN:2 * HIDDEN, :]
    b1 = p[0:HIDDEN, :]                       # (8, 1) -> broadcast over lanes
    b2 = p[HIDDEN:2 * HIDDEN, :]
    b3 = p[2 * HIDDEN:3 * HIDDEN, :]
    w4 = p[3 * HIDDEN:4 * HIDDEN, :]          # (8, 1) output-head weights
    b4 = p[4 * HIDDEN:4 * HIDDEN + 1, :]      # (1, 1)

    h = jnp.maximum(jnp.dot(w1, x, preferred_element_type=jnp.float32) + b1, 0.0)
    h = jnp.maximum(jnp.dot(w2, h, preferred_element_type=jnp.float32) + b2, 0.0)
    h = jnp.maximum(jnp.dot(w3, h, preferred_element_type=jnp.float32) + b3, 0.0)
    # Output layer (8 -> 1): VPU multiply + sublane reduce (lane-dense result).
    out = jnp.sum(h * w4, axis=0, keepdims=True) + b4        # (1, TB)
    out_ref[...] = out.astype(out_ref.dtype)


def pack_params(params):
    """Pack the 4 (weight, bias) pairs (PyTorch layout) into three small slabs."""
    (w1, b1), (w2, b2), (w3, b3), (w4, b4) = params
    w1 = jnp.asarray(w1, jnp.float32)                                    # (8, in)
    w23 = jnp.concatenate([jnp.asarray(w2, jnp.float32),
                           jnp.asarray(w3, jnp.float32)], axis=0)        # (16, 8)
    p = jnp.zeros((_P_ROWS, 1), jnp.float32)
    p = p.at[0:HIDDEN, 0].set(b1)
    p = p.at[HIDDEN:2 * HIDDEN, 0].set(b2)
    p = p.at[2 * HIDDEN:3 * HIDDEN, 0].set(b3)
    p = p.at[3 * HIDDEN:4 * HIDDEN, 0].set(w4[0])   # (1, 8) row -> sublane column
    p = p.at[4 * HIDDEN, 0].set(b4[0])
    return w1, w23, p


@functools.partial(jax.jit, static_argnames=("tb_max",))
def dqn_critic_forward(x, w1, w23, pvec, *, tb_max=32768):
    """Forward pass. x: (B, input_size) float32 -> (B, 1) float32."""
    B, in_features = x.shape

    # Batch tiling: pad only to a multiple of 128 lanes, then pick a balanced
    # tile size (multiple of 128, <= tb_max).  Padding waste < num_tiles * 128.
    b128 = _round_up(max(B, 1), 128)
    nt = max(1, pl.cdiv(b128, tb_max))
    if b128 >= 256:
        nt = max(nt, 2)                 # v7x: give both TensorCores a tile
    tb = _round_up(pl.cdiv(b128, nt), 128)
    nt = pl.cdiv(b128, tb)
    b_pad = nt * tb

    # Batch-on-lanes view (in_features, b_pad).  allow_input_fusion lets XLA
    # fuse this transpose/pad into the pallas call instead of materializing a
    # second copy of x in HBM.  (Producers that already keep the batch
    # feature-major can feed the kernel directly.)
    # TODO(synk): on v5e/v6e the x stream could be cast to bf16 (first dot in
    # bf16, f32 accumulate) to halve HBM bytes; kept f32 for exact parity.
    x_t = jnp.pad(x.astype(jnp.float32).T, ((0, 0), (0, b_pad - B)))

    flops = 2 * b_pad * (in_features * HIDDEN + 2 * HIDDEN * HIDDEN + HIDDEN)
    bytes_accessed = 4 * (in_features * b_pad + b_pad
                          + w1.size + w23.size + pvec.size)

    out_t = pl.pallas_call(
        dqn_critic_kernel,
        out_shape=jax.ShapeDtypeStruct((1, b_pad), jnp.float32),
        grid_spec=pltpu.PrefetchScalarGridSpec(
            num_scalar_prefetch=0,
            grid=(nt,),
            in_specs=[
                pl.BlockSpec((in_features, tb), lambda i: (0, i)),      # x: pipelined
                pl.BlockSpec((HIDDEN, in_features), lambda i: (0, 0)),  # W1: resident
                pl.BlockSpec((2 * HIDDEN, HIDDEN), lambda i: (0, 0)),   # W2|W3: resident
                pl.BlockSpec((_P_ROWS, 1), lambda i: (0, 0)),           # biases/head
            ],
            out_specs=pl.BlockSpec((1, tb), lambda i: (0, i)),
        ),
        compiler_params=pltpu.CompilerParams(
            dimension_semantics=("parallel",),          # shard batch tiles across TCs
            vmem_limit_bytes=32 * 1024 * 1024,          # explicit, v7x(64 MiB)-safe
            allow_input_fusion=[True, False, False, False],
        ),
        cost_estimate=pl.CostEstimate(
            flops=flops, transcendentals=0, bytes_accessed=bytes_accessed),
    )(x_t, w1, w23, pvec)

    return out_t[:, :B].T                      # back to PyTorch layout (B, 1)


def init_linear_params(key, in_features, out_features):
    """PyTorch nn.Linear default init: U(-1/sqrt(in), 1/sqrt(in)); (out, in) layout."""
    kw, kb = jax.random.split(key)
    bound = 1.0 / math.sqrt(in_features)
    w = jax.random.uniform(kw, (out_features, in_features), jnp.float32,
                           minval=-bound, maxval=bound)
    b = jax.random.uniform(kb, (out_features,), jnp.float32,
                           minval=-bound, maxval=bound)
    return w, b


def reference_forward(x, params):
    """Pure-JAX reference of the PyTorch forward (for correctness check)."""
    (w1, b1), (w2, b2), (w3, b3), (w4, b4) = params
    h = jnp.maximum(x @ w1.T + b1, 0.0)
    h = jnp.maximum(h @ w2.T + b2, 0.0)
    h = jnp.maximum(h @ w3.T + b3, 0.0)
    return h @ w4.T + b4


if __name__ == "__main__":
    key = jax.random.PRNGKey(0)
    k_x, k1, k2, k3, k4 = jax.random.split(key, 5)

    batch = 2
    input_size = 4  # pendulum critic: state_dim=3 + action_dim=1

    x = jax.random.normal(k_x, (batch, input_size), jnp.float32)
    params = (
        init_linear_params(k1, input_size, HIDDEN),
        init_linear_params(k2, HIDDEN, HIDDEN),
        init_linear_params(k3, HIDDEN, HIDDEN),
        init_linear_params(k4, HIDDEN, 1),
    )

    w1s, w23s, pvecs = pack_params(params)
    out = dqn_critic_forward(x, w1s, w23s, pvecs)
    out = jax.block_until_ready(out)

    ref = reference_forward(x, params)
    assert out.shape == (batch, 1), out.shape
    assert jnp.allclose(out, ref, atol=1e-5, rtol=1e-5), (out, ref)

    print("KERNEL_OK")
</pallas_src>

<mosaic_0001>
module attributes {stable_mosaic.version = 11 : i64} {
  func.func @dqn_critic_kernel(%arg0: i32, %arg1: memref<4x128xf32, #tpu.memory_space<vmem>>, %arg2: memref<8x4xf32, #tpu.memory_space<vmem>>, %arg3: memref<16x8xf32, #tpu.memory_space<vmem>>, %arg4: memref<40x1xf32, #tpu.memory_space<vmem>>, %arg5: memref<1x128xf32, #tpu.memory_space<vmem>>) attributes {dimension_semantics = [#tpu.dimension_semantics<parallel>], iteration_bounds = array<i64: 1>, scalar_prefetch = 0 : i64, scratch_operands = 0 : i64, tpu.core_type = #tpu.core_type<tc>, window_params = [{transform_indices = @transform_0, window_bounds = array<i64: 4, 128>}, {pipeline_mode = #tpu.pipeline_mode<synchronous>, transform_indices = @transform_1, window_bounds = array<i64: 8, 4>}, {pipeline_mode = #tpu.pipeline_mode<synchronous>, transform_indices = @transform_2, window_bounds = array<i64: 16, 8>}, {pipeline_mode = #tpu.pipeline_mode<synchronous>, transform_indices = @transform_3, window_bounds = array<i64: 40, 1>}, {transform_indices = @transform_4, window_bounds = array<i64: 1, 128>}]} {
    %c0 = arith.constant 0 : index
    %c0_0 = arith.constant 0 : index
    %0 = vector.load %arg1[%c0, %c0_0] : memref<4x128xf32, #tpu.memory_space<vmem>>, vector<4x128xf32>
    %c0_1 = arith.constant 0 : index
    %c0_2 = arith.constant 0 : index
    %1 = vector.load %arg2[%c0_1, %c0_2] : memref<8x4xf32, #tpu.memory_space<vmem>>, vector<8x4xf32>
    %c0_3 = arith.constant 0 : index
    %c0_4 = arith.constant 0 : index
    %2 = vector.load %arg3[%c0_3, %c0_4] : memref<16x8xf32, #tpu.memory_space<vmem>>, vector<16x8xf32>
    %c0_5 = arith.constant 0 : index
    %c0_6 = arith.constant 0 : index
    %3 = vector.load %arg4[%c0_5, %c0_6] : memref<40x1xf32, #tpu.memory_space<vmem>>, vector<40x1xf32>
    %4 = vector.extract_strided_slice %2 {offsets = [0, 0], sizes = [8, 8], strides = [1, 1]} : vector<16x8xf32> to vector<8x8xf32>
    %5 = vector.extract_strided_slice %2 {offsets = [8, 0], sizes = [8, 8], strides = [1, 1]} : vector<16x8xf32> to vector<8x8xf32>
    %6 = vector.extract_strided_slice %3 {offsets = [0, 0], sizes = [8, 1], strides = [1, 1]} : vector<40x1xf32> to vector<8x1xf32>
    %7 = vector.extract_strided_slice %3 {offsets = [8, 0], sizes = [8, 1], strides = [1, 1]} : vector<40x1xf32> to vector<8x1xf32>
    %8 = vector.extract_strided_slice %3 {offsets = [16, 0], sizes = [8, 1], strides = [1, 1]} : vector<40x1xf32> to vector<8x1xf32>
    %9 = vector.extract_strided_slice %3 {offsets = [24, 0], sizes = [8, 1], strides = [1, 1]} : vector<40x1xf32> to vector<8x1xf32>
    %10 = vector.extract_strided_slice %3 {offsets = [32, 0], sizes = [1, 1], strides = [1, 1]} : vector<40x1xf32> to vector<1x1xf32>
    %cst = arith.constant dense<0.000000e+00> : vector<8x128xf32>
    %11 = tpu.matmul %1, %0, %cst {dimension_numbers = #tpu.dot_dimension_numbers<[1], [0], [0], [1], [0, 0, 1, 1], [], []>} : vector<8x4xf32>, vector<4x128xf32>, vector<8x128xf32> -> vector<8x128xf32>
    %12 = vector.broadcast %6 : vector<8x1xf32> to vector<8x128xf32>
    %13 = arith.addf %11, %12 : vector<8x128xf32>
    %cst_7 = arith.constant 0.000000e+00 : f32
    %14 = vector.broadcast %cst_7 : f32 to vector<8x128xf32>
    %15 = arith.maximumf %13, %14 : vector<8x128xf32>
    %cst_8 = arith.constant dense<0.000000e+00> : vector<8x128xf32>
    %16 = tpu.matmul %4, %15, %cst_8 {dimension_numbers = #tpu.dot_dimension_numbers<[1], [0], [0], [1], [0, 0, 1, 1], [], []>} : vector<8x8xf32>, vector<8x128xf32>, vector<8x128xf32> -> vector<8x128xf32>
    %17 = vector.broadcast %7 : vector<8x1xf32> to vector<8x128xf32>
    %18 = arith.addf %16, %17 : vector<8x128xf32>
    %cst_9 = arith.constant 0.000000e+00 : f32
    %19 = vector.broadcast %cst_9 : f32 to vector<8x128xf32>
    %20 = arith.maximumf %18, %19 : vector<8x128xf32>
    %cst_10 = arith.constant dense<0.000000e+00> : vector<8x128xf32>
    %21 = tpu.matmul %5, %20, %cst_10 {dimension_numbers = #tpu.dot_dimension_numbers<[1], [0], [0], [1], [0, 0, 1, 1], [], []>} : vector<8x8xf32>, vector<8x128xf32>, vector<8x128xf32> -> vector<8x128xf32>
    %22 = vector.broadcast %8 : vector<8x1xf32> to vector<8x128xf32>
    %23 = arith.addf %21, %22 : vector<8x128xf32>
    %cst_11 = arith.constant 0.000000e+00 : f32
    %24 = vector.broadcast %cst_11 : f32 to vector<8x128xf32>
    %25 = arith.maximumf %23, %24 : vector<8x128xf32>
    %26 = vector.broadcast %9 : vector<8x1xf32> to vector<8x128xf32>
    %27 = arith.mulf %25, %26 : vector<8x128xf32>
    %cst_12 = arith.constant dense<0.000000e+00> : vector<128xf32>
    %28 = vector.multi_reduction <add>, %27, %cst_12 [0] : vector<8x128xf32> to vector<128xf32>
    %29 = vector.shape_cast %28 : vector<128xf32> to vector<1x128xf32>
    %30 = vector.broadcast %10 : vector<1x1xf32> to vector<1x128xf32>
    %31 = arith.addf %29, %30 : vector<1x128xf32>
    %c0_13 = arith.constant 0 : index
    %c0_14 = arith.constant 0 : index
    %32 = vector.load %arg5[%c0_13, %c0_14] : memref<1x128xf32, #tpu.memory_space<vmem>>, vector<1x128xf32>
    tpu.vector_store %arg5[%c0_13, %c0_14], %31 {strides = array<i32>} : memref<1x128xf32, #tpu.memory_space<vmem>>, vector<1x128xf32>,
    return
  }
  func.func @transform_0(%arg0: i32) -> (i32, i32) {
    %c0_i32 = arith.constant 0 : i32
    %c0_i32_0 = arith.constant 0 : i32
    return %c0_i32, %arg0 : i32, i32
  }
  func.func @transform_1(%arg0: i32) -> (i32, i32) {
    %c0_i32 = arith.constant 0 : i32
    %c0_i32_0 = arith.constant 0 : i32
    %c0_i32_1 = arith.constant 0 : i32
    return %c0_i32, %c0_i32_0 : i32, i32
  }
  func.func @transform_2(%arg0: i32) -> (i32, i32) {
    %c0_i32 = arith.constant 0 : i32
    %c0_i32_0 = arith.constant 0 : i32
    %c0_i32_1 = arith.constant 0 : i32
    return %c0_i32, %c0_i32_0 : i32, i32
  }
  func.func @transform_3(%arg0: i32) -> (i32, i32) {
    %c0_i32 = arith.constant 0 : i32
    %c0_i32_0 = arith.constant 0 : i32
    %c0_i32_1 = arith.constant 0 : i32
    return %c0_i32, %c0_i32_0 : i32, i32
  }
  func.func @transform_4(%arg0: i32) -> (i32, i32) {
    %c0_i32 = arith.constant 0 : i32
    %c0_i32_0 = arith.constant 0 : i32
    return %c0_i32, %arg0 : i32, i32
  }
}

</mosaic_0001>

<llo_original>
// kernel: dqn_critic_forward.2
$region0: #{dqn_critic_forward.2}
  #allocation0 [shape = 'u32[]', space=smem, size = 0x4, offset = 0x4, fixed_abs, tag = 'smem constant byte address 0x4 - core index']
  #allocation1 [shape = 'u32[144,128]{1,0:T(1,128)}', space=vmem, size = 0x12000, scoped, tag = 'internal scratch']
  #allocation2 [shape = 'u32[2048]{0}', space=vmem, size = 0x2000, scoped, tag = 'scoped memory for dqn_critic_forward.2']
  #allocation3 [shape = 'u32[2048]{0}', space=vmem, size = 0x2000, scoped, tag = 'scoped memory for dqn_critic_forward.2']
  #allocation4 [shape = 'u32[2048]{0}', space=vmem, size = 0x2000, scoped, tag = 'scoped memory for dqn_critic_forward.2']
  #allocation5 [shape = 'u32[2048]{0}', space=vmem, size = 0x2000, scoped, tag = 'scoped memory for dqn_critic_forward.2']
  #allocation6 [shape = 'u32[2048]{0}', space=vmem, size = 0x2000, scoped, tag = 'scoped memory for dqn_critic_forward.2']
  %s0 = inlined_call_operand.vmem [shape: f32[8,4], index: 0, kind: input, shape index: {}]
  %s1 = inlined_call_operand.vmem [shape: f32[16,8], index: 1, kind: input, shape index: {}]
  %s2 = inlined_call_operand.vmem [shape: f32[40,1], index: 2, kind: input, shape index: {}]
  %s3 = inlined_call_operand.vmem [shape: f32[4,2], index: 3, kind: input, shape index: {}]
  %s4 = inlined_call_operand.<no memory space> [shape: f32[], index: 4, kind: input, shape index: {}]
  %s5 = inlined_call_operand.vmem [shape: f32[1,128], index: 5, kind: output, shape index: {}]
  %s6 = sld [smem:[#allocation0]]
  $region26: #{dqn_critic_forward.2} parent=0
    _
  %s8 = ssub.s32 1, %s6
  %s9 = scalar_select 0, %s8, %s6
  %v10 = vstv %s4
  $region1: #{dqn_critic_forward.2} parent=0
    #allocation7 [shape = 'u8[2048]{0}', space=vmem, size = 0x800, dematerialized = true, scoped, tag = 'FusionAdapter Buffer %fusion.1 = f32[4,128]{1,0:T(4,128)} fusion(%param_3.1, %param_4), kind=kLoop, calls=%fused_computation.1.clone, metadata={op_name="jit(dqn_critic_forward)/jit(_pad)/pad" stack_frame_id=8}']
    // Predicated region
    $region2: #{dqn_critic_forward.2} parent=1 // pred_check
      _
    $region3: #{dqn_critic_forward.2} parent=1 // pred_check_branch
      %12 = sbr.rel (0) target = $region5
    $region4: #{dqn_critic_forward.2} parent=1 // pred_region
      _
    $region5: #{dqn_critic_forward.2} parent=1 // pred_fallthru
      _
    // Predicated region
    $region6: #{dqn_critic_forward.2} parent=1 // pred_check
      _
    $region7: #{dqn_critic_forward.2} parent=1 // pred_check_branch
      %14 = sbr.rel (0) target = $region9
    $region8: #{dqn_critic_forward.2} parent=1 // pred_region
      _
    $region9: #{dqn_critic_forward.2} parent=1 // pred_fallthru
      _
    // Predicated region
    $region10: #{dqn_critic_forward.2} parent=1 // pred_check
      _
    $region11: #{dqn_critic_forward.2} parent=1 // pred_check_branch
      %16 = sbr.rel (0) target = $region13
    $region12: #{dqn_critic_forward.2} parent=1 // pred_region
      _
    $region13: #{dqn_critic_forward.2} parent=1 // pred_fallthru
      _
    // Predicated region
    $region14: #{dqn_critic_forward.2} parent=1 // pred_check
      _
    $region15: #{dqn_critic_forward.2} parent=1 // pred_check_branch
      %18 = sbr.rel (0) target = $region17
    $region16: #{dqn_critic_forward.2} parent=1 // pred_region
      _
    $region17: #{dqn_critic_forward.2} parent=1 // pred_fallthru
      _
    %v19 = vld [vmem:[%s3] sm:$0xf]
    %v20 = vlaneseq
    %v21 = vshrl.u32 %v20, 7
    %vm23 = vcmp.lt.s32.totalorder %v21, 4
    %v24 = vsel %vm23, %v19, %v10
    %v25 = vlaneseq
    %v26 = vand.u32 %v25, 127
    %vm28 = vcmp.lt.s32.totalorder %v26, 2
    %v29 = vsel %vm28, %v24, %v10
    %31 = vst [vmem:[#allocation7] sm:$0xf] %v29
    %v32 = vld [vmem:[#allocation7] sm:$0xf]
    %v33 = vld [vmem:[%s0] sm:$0xff]
    %v34 = vld [vmem:[%s1] sm:$0xff]
    %v35 = vld [vmem:[%s1 + $0x8] sm:$0xff]
    %v36 = vld [vmem:[%s2] sm:$0xff]
    %v37 = vld [vmem:[%s2 + $0x8] sm:$0xff]
    %v38 = vld [vmem:[%s2 + $0x10] sm:$0xff]
    %v39 = vld [vmem:[%s2 + $0x18] sm:$0xff]
    %v40 = vld [vmem:[%s2 + $0x20] sm:$0xff]
    %42 = vset.pattern.permute.xlu0 0
    %43 = vperm.xlu0 %42, %v36
    %v44 = vpop.permute.xlu0 %43
    %vm46 = vcmask 31744
    %v48 = vsel %vm46, %v33, 0
    %vm50 = vcmask 1043456
    %v52 = vsel %vm50, %v32, 0
    %54 = vmatprep.subr.mxu0 0.0
    %55 = vmatpush1.msra.mxu0 %v52
    %56 = vmatprep.subr.mxu0 0.0
    %57 = vmatpush1.msra.mxu0 0.0
    %58 = vmatprep.subr.mxu0 0.0
    %59 = vmatpush1.msra.mxu0 0.0
    %60 = vmatprep.subr.mxu0 0.0
    %61 = vmatpush1.msra.mxu0 0.0
    %62 = vmatprep.subr.mxu0 0.0
    %63 = vmatpush1.msra.mxu0 0.0
    %64 = vmatprep.subr.mxu0 0.0
    %65 = vmatpush1.msra.mxu0 0.0
    %66 = vmatprep.subr.mxu0 0.0
    %67 = vmatpush1.msra.mxu0 0.0
    %68 = vmatprep.subr.mxu0 0.0
    %69 = vmatpush1.msra.mxu0 0.0
    %70 = vmatprep.subr.mxu0 0.0
    %71 = vmatpush1.msra.mxu0 0.0
    %72 = vmatprep.subr.mxu0 0.0
    %73 = vmatpush1.msra.mxu0 0.0
    %74 = vmatprep.subr.mxu0 0.0
    %75 = vmatpush1.msra.mxu0 0.0
    %76 = vmatprep.subr.mxu0 0.0
    %77 = vmatpush1.msra.mxu0 0.0
    %78 = vmatprep.subr.mxu0 0.0
    %79 = vmatpush1.msra.mxu0 0.0
    %80 = vmatprep.subr.mxu0 0.0
    %81 = vmatpush1.msra.mxu0 0.0
    %82 = vmatprep.subr.mxu0 0.0
    %83 = vmatpush1.msra.mxu0 0.0
    %84 = vmatprep.subr.mxu0 0.0
    %85 = vmatpush1.msra.mxu0 0.0
    %86 = vmatprep.subr.mxu0 0.0
    %87 = vmatpush1.msra.mxu0 0.0
    %88 = vmatprep.subr.mxu0 0.0
    %89 = vmatpush1.msra.mxu0 0.0
    %90 = vmatprep.subr.mxu0 0.0
    %91 = vmatpush1.msra.mxu0 0.0
    %92 = vmatprep.subr.mxu0 0.0
    %93 = vmatpush1.msra.mxu0 0.0
    %94 = vmatprep.subr.mxu0 0.0
    %95 = vmatpush1.msra.mxu0 0.0
    %96 = vmatprep.subr.mxu0 0.0
    %97 = vmatpush1.msra.mxu0 0.0
    %98 = vmatprep.subr.mxu0 0.0
    %99 = vmatpush1.msra.mxu0 0.0
    %100 = vmatprep.subr.mxu0 0.0
    %101 = vmatpush1.msra.mxu0 0.0
    %102 = vmatprep.subr.mxu0 0.0
    %103 = vmatpush1.msra.mxu0 0.0
    %104 = vmatprep.subr.mxu0 0.0
    %105 = vmatpush1.msra.mxu0 0.0
    %106 = vmatprep.subr.mxu0 0.0
    %107 = vmatpush1.msra.mxu0 0.0
    %108 = vmatprep.subr.mxu0 0.0
    %109 = vmatpush1.msra.mxu0 0.0
    %110 = vmatprep.subr.mxu0 0.0
    %111 = vmatpush1.msra.mxu0 0.0
    %112 = vmatprep.subr.mxu0 0.0
    %113 = vmatpush1.msra.mxu0 0.0
    %114 = vmatprep.subr.mxu0 0.0
    %115 = vmatpush1.msra.mxu0 0.0
    %116 = vmatprep.subr.mxu0 0.0
    %117 = vmatpush1.msra.mxu0 0.0
    %118 = vmatprep.mubr.f32.mxu0 0.0
    %119 = vmatmul.mubr.f32.gmra.mrb[0].mxu0 %v48
    %v120 = vpop.f32.mrb[0].mxu0
    %v121 = vadd.f32 %v44, %v120
    %v122 = vpop.f32.mrb[0].mxu0
    %123 = vdwg.mxu0
    %v124 = vmax.f32 %v121, 0.0
    %126 = vset.pattern.permute.xlu0 0
    %127 = vperm.xlu0 %126, %v37
    %v128 = vpop.permute.xlu0 %127
    %vm130 = vcmask 64512
    %v132 = vsel %vm130, %v34, 0
    %134 = vmatprep.subr.mxu0 0.0
    %135 = vmatpush1.msra.mxu0 %v124
    %136 = vmatprep.subr.mxu0 0.0
    %137 = vmatpush1.msra.mxu0 0.0
    %138 = vmatprep.subr.mxu0 0.0
    %139 = vmatpush1.msra.mxu0 0.0
    %140 = vmatprep.subr.mxu0 0.0
    %141 = vmatpush1.msra.mxu0 0.0
    %142 = vmatprep.subr.mxu0 0.0
    %143 = vmatpush1.msra.mxu0 0.0
    %144 = vmatprep.subr.mxu0 0.0
    %145 = vmatpush1.msra.mxu0 0.0
    %146 = vmatprep.subr.mxu0 0.0
    %147 = vmatpush1.msra.mxu0 0.0
    %148 = vmatprep.subr.mxu0 0.0
    %149 = vmatpush1.msra.mxu0 0.0
    %150 = vmatprep.subr.mxu0 0.0
    %151 = vmatpush1.msra.mxu0 0.0
    %152 = vmatprep.subr.mxu0 0.0
    %153 = vmatpush1.msra.mxu0 0.0
    %154 = vmatprep.subr.mxu0 0.0
    %155 = vmatpush1.msra.mxu0 0.0
    %156 = vmatprep.subr.mxu0 0.0
    %157 = vmatpush1.msra.mxu0 0.0
    %158 = vmatprep.subr.mxu0 0.0
    %159 = vmatpush1.msra.mxu0 0.0
    %160 = vmatprep.subr.mxu0 0.0
    %161 = vmatpush1.msra.mxu0 0.0
    %162 = vmatprep.subr.mxu0 0.0
    %163 = vmatpush1.msra.mxu0 0.0
    %164 = vmatprep.subr.mxu0 0.0
    %165 = vmatpush1.msra.mxu0 0.0
    %166 = vmatprep.subr.mxu0 0.0
    %167 = vmatpush1.msra.mxu0 0.0
    %168 = vmatprep.subr.mxu0 0.0
    %169 = vmatpush1.msra.mxu0 0.0
    %170 = vmatprep.subr.mxu0 0.0
    %171 = vmatpush1.msra.mxu0 0.0
    %172 = vmatprep.subr.mxu0 0.0
    %173 = vmatpush1.msra.mxu0 0.0
    %174 = vmatprep.subr.mxu0 0.0
    %175 = vmatpush1.msra.mxu0 0.0
    %176 = vmatprep.subr.mxu0 0.0
    %177 = vmatpush1.msra.mxu0 0.0
    %178 = vmatprep.subr.mxu0 0.0
    %179 = vmatpush1.msra.mxu0 0.0
    %180 = vmatprep.subr.mxu0 0.0
    %181 = vmatpush1.msra.mxu0 0.0
    %182 = vmatprep.subr.mxu0 0.0
    %183 = vmatpush1.msra.mxu0 0.0
    %184 = vmatprep.subr.mxu0 0.0
    %185 = vmatpush1.msra.mxu0 0.0
    %186 = vmatprep.subr.mxu0 0.0
    %187 = vmatpush1.msra.mxu0 0.0
    %188 = vmatprep.subr.mxu0 0.0
    %189 = vmatpush1.msra.mxu0 0.0
    %190 = vmatprep.subr.mxu0 0.0
    %191 = vmatpush1.msra.mxu0 0.0
    %192 = vmatprep.subr.mxu0 0.0
    %193 = vmatpush1.msra.mxu0 0.0
    %194 = vmatprep.subr.mxu0 0.0
    %195 = vmatpush1.msra.mxu0 0.0
    %196 = vmatprep.subr.mxu0 0.0
    %197 = vmatpush1.msra.mxu0 0.0
    %198 = vmatprep.mubr.f32.mxu0 0.0
    %199 = vmatmul.mubr.f32.gmra.mrb[0].mxu0 %v132
    %v200 = vpop.f32.mrb[0].mxu0
    %v201 = vadd.f32 %v128, %v200
    %v202 = vpop.f32.mrb[0].mxu0
    %203 = vdwg.mxu0
    %v204 = vmax.f32 %v201, 0.0
    %206 = vset.pattern.permute.xlu0 0
    %207 = vperm.xlu0 %206, %v38
    %v208 = vpop.permute.xlu0 %207
    %v211 = vsel %vm130, %v35, 0
    %213 = vmatprep.subr.mxu0 0.0
    %214 = vmatpush1.msra.mxu0 %v204
    %215 = vmatprep.subr.mxu0 0.0
    %216 = vmatpush1.msra.mxu0 0.0
    %217 = vmatprep.subr.mxu0 0.0
    %218 = vmatpush1.msra.mxu0 0.0
    %219 = vmatprep.subr.mxu0 0.0
    %220 = vmatpush1.msra.mxu0 0.0
    %221 = vmatprep.subr.mxu0 0.0
    %222 = vmatpush1.msra.mxu0 0.0
    %223 = vmatprep.subr.mxu0 0.0
    %224 = vmatpush1.msra.mxu0 0.0
    %225 = vmatprep.subr.mxu0 0.0
    %226 = vmatpush1.msra.mxu0 0.0
    %227 = vmatprep.subr.mxu0 0.0
    %228 = vmatpush1.msra.mxu0 0.0
    %229 = vmatprep.subr.mxu0 0.0
    %230 = vmatpush1.msra.mxu0 0.0
    %231 = vmatprep.subr.mxu0 0.0
    %232 = vmatpush1.msra.mxu0 0.0
    %233 = vmatprep.subr.mxu0 0.0
    %234 = vmatpush1.msra.mxu0 0.0
    %235 = vmatprep.subr.mxu0 0.0
    %236 = vmatpush1.msra.mxu0 0.0
    %237 = vmatprep.subr.mxu0 0.0
    %238 = vmatpush1.msra.mxu0 0.0
    %239 = vmatprep.subr.mxu0 0.0
    %240 = vmatpush1.msra.mxu0 0.0
    %241 = vmatprep.subr.mxu0 0.0
    %242 = vmatpush1.msra.mxu0 0.0
    %243 = vmatprep.subr.mxu0 0.0
    %244 = vmatpush1.msra.mxu0 0.0
    %245 = vmatprep.subr.mxu0 0.0
    %246 = vmatpush1.msra.mxu0 0.0
    %247 = vmatprep.subr.mxu0 0.0
    %248 = vmatpush1.msra.mxu0 0.0
    %249 = vmatprep.subr.mxu0 0.0
    %250 = vmatpush1.msra.mxu0 0.0
    %251 = vmatprep.subr.mxu0 0.0
    %252 = vmatpush1.msra.mxu0 0.0
    %253 = vmatprep.subr.mxu0 0.0
    %254 = vmatpush1.msra.mxu0 0.0
    %255 = vmatprep.subr.mxu0 0.0
    %256 = vmatpush1.msra.mxu0 0.0
    %257 = vmatprep.subr.mxu0 0.0
    %258 = vmatpush1.msra.mxu0 0.0
    %259 = vmatprep.subr.mxu0 0.0
    %260 = vmatpush1.msra.mxu0 0.0
    %261 = vmatprep.subr.mxu0 0.0
    %262 = vmatpush1.msra.mxu0 0.0
    %263 = vmatprep.subr.mxu0 0.0
    %264 = vmatpush1.msra.mxu0 0.0
    %265 = vmatprep.subr.mxu0 0.0
    %266 = vmatpush1.msra.mxu0 0.0
    %267 = vmatprep.subr.mxu0 0.0
    %268 = vmatpush1.msra.mxu0 0.0
    %269 = vmatprep.subr.mxu0 0.0
    %270 = vmatpush1.msra.mxu0 0.0
    %271 = vmatprep.subr.mxu0 0.0
    %272 = vmatpush1.msra.mxu0 0.0
    %273 = vmatprep.subr.mxu0 0.0
    %274 = vmatpush1.msra.mxu0 0.0
    %275 = vmatprep.subr.mxu0 0.0
    %276 = vmatpush1.msra.mxu0 0.0
    %277 = vmatprep.mubr.f32.mxu0 0.0
    %278 = vmatmul.mubr.f32.gmra.mrb[0].mxu0 %v211
    %v279 = vpop.f32.mrb[0].mxu0
    %v280 = vadd.f32 %v208, %v279
    %v281 = vpop.f32.mrb[0].mxu0
    %282 = vdwg.mxu0
    %v283 = vmax.f32 %v280, 0.0
    %285 = vset.pattern.permute.xlu0 0
    %286 = vperm.xlu0 %285, %v39
    %v287 = vpop.permute.xlu0 %286
    %v289 = vmul.f32 %v283, %v287
    %v290 = vrot.slane %v289, 4
    %v291 = vadd.f32 %v289, %v290
    %v292 = vrot.slane %v291, 2
    %v293 = vadd.f32 %v291, %v292
    %v294 = vrot.slane %v293, 1
    %v295 = vadd.f32 %v293, %v294
    %297 = vset.pattern.permute.xlu0 0
    %298 = vperm.xlu0 %297, %v40
    %v299 = vpop.permute.xlu0 %298
    %v301 = vadd.f32 %v295, %v299
    %302 = vst [vmem:[%s5] sm:$0x1] %v301
    // Predicated region
    $region18: #{dqn_critic_forward.2} parent=1 // pred_check
      _
    $region19: #{dqn_critic_forward.2} parent=1 // pred_check_branch
      %304 = sbr.rel (0) target = $region21
    $region20: #{dqn_critic_forward.2} parent=1 // pred_region
      _
    $region21: #{dqn_critic_forward.2} parent=1 // pred_fallthru
      _
    // Predicated region
    $region22: #{dqn_critic_forward.2} parent=1 // pred_check
      _
    $region23: #{dqn_critic_forward.2} parent=1 // pred_check_branch
      %306 = sbr.rel (0) target = $region25
    $region24: #{dqn_critic_forward.2} parent=1 // pred_region
      _
    $region25: #{dqn_critic_forward.2} parent=1 // pred_fallthru
      _

</llo_original>
